<compile_context>
chip_gen: v7x
topology: tpu7x:2x2x1
jax: 0.10.0
libtpu: 0.0.40
codegen_flags: <defaults>
</compile_context>

<pallas_src>
import jax
import jax.numpy as jnp
from jax.experimental import pallas as pl
from jax.experimental.pallas import tpu as pltpu


def _vq_kernel(emb_ref, embT_ref, e2_ref, x_ref, q_ref, hist_ref, sse_ref):
    """One (batch b, spatial tile t) step of vector quantization.

    emb_ref  : (K, D)       codebook
    embT_ref : (D, K)       codebook, transposed (hoisted in wrapper)
    e2_ref   : (K, 1)       per-codeword squared norms (hoisted in wrapper)
    x_ref    : (1, D, TM)   input tile, channel-major (NCHW-derived)
    q_ref    : (1, D, TM)   quantized output tile, channel-major
    hist_ref : (1, K, 1)    per-batch codeword histogram (accumulator over t)
    sse_ref  : (1, 1, 1)    per-batch sum of squared error (accumulator over t)
    """
    t = pl.program_id(1)

    x_t = x_ref[0]                       # (D, TM)
    emb = emb_ref[...]                   # (K, D)
    K = emb.shape[0]
    TM = x_t.shape[1]

    # Squared distances, transposed: dist[k, m] = |x_m|^2 + |e_k|^2 - 2 e_k.x_m
    x2 = jnp.sum(x_t * x_t, axis=0, keepdims=True)                        # (1, TM)
    cross = jnp.dot(emb, x_t, preferred_element_type=jnp.float32)         # (K, TM)
    dist = x2 + e2_ref[...] - 2.0 * cross                                 # (K, TM)

    # argmin over the codebook axis (first minimum on ties, like torch.argmin)
    min_d = jnp.min(dist, axis=0, keepdims=True)                          # (1, TM)
    k_iota = jax.lax.broadcasted_iota(jnp.int32, (K, TM), 0).astype(jnp.float32)
    cand = jnp.where(dist <= min_d, k_iota, jnp.float32(K))               # (K, TM)
    idx = jnp.min(cand, axis=0, keepdims=True)                            # (1, TM)
    one_hot = (k_iota == idx).astype(jnp.float32)                         # (K, TM)

    # Quantized vectors, already channel-major: (D, K) @ (K, TM) -> (D, TM)
    q_t = jnp.dot(embT_ref[...], one_hot, preferred_element_type=jnp.float32)
    q_ref[0] = q_t

    # Initialise the per-batch accumulators on the first spatial tile.
    @pl.when(t == 0)
    def _init():
        hist_ref[...] = jnp.zeros_like(hist_ref)
        sse_ref[...] = jnp.zeros_like(sse_ref)

    # Per-batch codeword histogram (== torch.histc over integer indices).
    hist_ref[0] = hist_ref[0] + jnp.sum(one_hot, axis=1, keepdims=True)   # (K, 1)

    # Sum of squared error for the VQ loss.
    diff = q_t - x_t
    sse_ref[0] = sse_ref[0] + jnp.sum(diff * diff, keepdims=True)         # (1, 1)


def _pick_tile(hw, target=1024):
    """Largest spatial tile <= target that is a multiple of 128 and divides hw."""
    if hw <= target:
        return hw
    best = hw
    t = 128
    while t <= target:
        if hw % t == 0:
            best = t
        t += 128
    return best


def vector_quantize(x_nchw, embedding, *, commitment_cost=0.25, tm=None):
    """Pallas implementation of VectorQuantizer.forward.

    x_nchw    : (B, D, H, W) float input (PyTorch NCHW layout)
    embedding : (K, D) codebook
    returns   : (quantized NCHW, loss scalar, index_histogram (B, K))
    """
    x = x_nchw.astype(jnp.float32)
    B, D, H, W = x.shape
    K, D2 = embedding.shape
    assert D == D2, "embedding_dim mismatch"
    HW = H * W

    if tm is None:
        tm = _pick_tile(HW)
    if HW % tm != 0:
        raise ValueError(f"spatial size {HW} not divisible by tile {tm}")
    n_t = HW // tm

    # Free reshape: NCHW row-major -> (B, D, H*W); no transpose needed.
    x_flat = x.reshape(B, D, HW)

    # Hoisted codebook-side quantities (computed once, not per grid step).
    emb = embedding.astype(jnp.float32)            # (K, D)
    embT = emb.T                                   # (D, K)
    e2 = jnp.sum(emb * emb, axis=1, keepdims=True)  # (K, 1)

    flops = int(4 * B * HW * K * D)                       # two matmuls per element
    bytes_accessed = int(4 * (2 * B * HW * D + 2 * K * D + K + B * (K + 1)))

    q_flat, hist, sse = pl.pallas_call(
        _vq_kernel,
        out_shape=(
            jax.ShapeDtypeStruct((B, D, HW), jnp.float32),   # quantized (channel-major)
            jax.ShapeDtypeStruct((B, K, 1), jnp.float32),    # per-batch histogram
            jax.ShapeDtypeStruct((B, 1, 1), jnp.float32),    # per-batch SSE
        ),
        grid_spec=pltpu.PrefetchScalarGridSpec(
            num_scalar_prefetch=0,
            grid=(B, n_t),
            in_specs=[
                pl.BlockSpec((K, D), lambda b, t: (0, 0)),       # codebook
                pl.BlockSpec((D, K), lambda b, t: (0, 0)),       # codebook^T
                pl.BlockSpec((K, 1), lambda b, t: (0, 0)),       # |e_k|^2
                pl.BlockSpec((1, D, tm), lambda b, t: (b, 0, t)),  # input tile
            ],
            out_specs=(
                pl.BlockSpec((1, D, tm), lambda b, t: (b, 0, t)),  # quantized tile
                pl.BlockSpec((1, K, 1), lambda b, t: (b, 0, 0)),   # histogram (acc over t)
                pl.BlockSpec((1, 1, 1), lambda b, t: (b, 0, 0)),   # SSE (acc over t)
            ),
        ),
        compiler_params=pltpu.CompilerParams(
            dimension_semantics=("parallel", "arbitrary"),
            vmem_limit_bytes=32 * 1024 * 1024,
        ),
        cost_estimate=pl.CostEstimate(
            flops=flops, transcendentals=0, bytes_accessed=bytes_accessed),
    )(emb, embT, e2, x_flat)

    quantized = q_flat.reshape(B, D, H, W)            # already NCHW
    mse = jnp.sum(sse) / (B * D * H * W)
    # q_latent_loss + commitment_cost * e_latent_loss; both equal mse in value.
    loss = (1.0 + commitment_cost) * mse
    index_histogram = hist[:, :, 0]                   # (B, K)
    # Straight-through output value equals `quantized` in the forward pass.
    return quantized, loss, index_histogram


def _ref_forward(x_nchw, emb, commitment_cost=0.25):
    """Plain-JAX reference mirroring the PyTorch module's forward values."""
    B, D, H, W = x_nchw.shape
    K = emb.shape[0]
    in_re = jnp.transpose(x_nchw, (0, 2, 3, 1))            # NHWC
    x_fla = in_re.reshape(-1, D)
    dist = (jnp.sum(x_fla ** 2, axis=1, keepdims=True)
            + jnp.sum(emb ** 2, axis=1)
            - 2.0 * (x_fla @ emb.T))
    idx = jnp.argmin(dist, axis=1)
    hist = jax.vmap(lambda r: jnp.bincount(r, length=K))(
        idx.reshape(B, -1)).astype(jnp.float32)
    quant = emb[idx].reshape(B, H, W, D)
    mse = jnp.mean((quant - in_re) ** 2)
    loss = (1.0 + commitment_cost) * mse
    return jnp.transpose(quant, (0, 3, 1, 2)), loss, hist


if __name__ == "__main__":
    key = jax.random.PRNGKey(0)
    kx, ke = jax.random.split(key)

    B, D, S = 2, 4, 16          # batch, embedding_dim (channels), spatial
    K = 32                      # num_embeddings
    x = jax.random.normal(kx, (B, D, S, S), jnp.float32)                 # NCHW
    emb = jax.random.uniform(ke, (K, D), jnp.float32, -1.0 / K, 1.0 / K)  # codebook

    # tm=128 -> grid (B=2 parallel, n_t=2 arbitrary): exercises pipelining and
    # the cross-tile histogram / SSE accumulation.
    quant, loss, hist = vector_quantize(x, emb, tm=128)
    quant = jax.block_until_ready(quant)

    q_ref, l_ref, h_ref = _ref_forward(x, emb)

    assert quant.shape == x.shape and quant.dtype == jnp.float32
    assert hist.shape == (B, K)
    assert jnp.allclose(quant, q_ref, atol=1e-4, rtol=1e-4), "quantized mismatch"
    assert jnp.allclose(hist, h_ref, atol=1e-3), "histogram mismatch"
    assert jnp.allclose(loss, l_ref, atol=1e-5, rtol=1e-4), "loss mismatch"
    assert jnp.allclose(jnp.sum(hist), B * S * S), "histogram mass mismatch"

    print("KERNEL_OK")
</pallas_src>

<mosaic_0001>
module attributes {stable_mosaic.version = 11 : i64} {
  func.func @_vq_kernel(%arg0: i32, %arg1: i32, %arg2: memref<32x4xf32, #tpu.memory_space<vmem>>, %arg3: memref<4x32xf32, #tpu.memory_space<vmem>>, %arg4: memref<32x1xf32, #tpu.memory_space<vmem>>, %arg5: memref<1x4x128xf32, #tpu.memory_space<vmem>>, %arg6: memref<1x4x128xf32, #tpu.memory_space<vmem>>, %arg7: memref<1x32x1xf32, #tpu.memory_space<vmem>>, %arg8: memref<1x1x1xf32, #tpu.memory_space<vmem>>) attributes {dimension_semantics = [#tpu.dimension_semantics<parallel>, #tpu.dimension_semantics<arbitrary>], iteration_bounds = array<i64: 2, 2>, scalar_prefetch = 0 : i64, scratch_operands = 0 : i64, tpu.core_type = #tpu.core_type<tc>, window_params = [{pipeline_mode = #tpu.pipeline_mode<synchronous>, transform_indices = @transform_0, window_bounds = array<i64: 32, 4>}, {pipeline_mode = #tpu.pipeline_mode<synchronous>, transform_indices = @transform_1, window_bounds = array<i64: 4, 32>}, {pipeline_mode = #tpu.pipeline_mode<synchronous>, transform_indices = @transform_2, window_bounds = array<i64: 32, 1>}, {transform_indices = @transform_3, window_bounds = array<i64: 1, 4, 128>}, {transform_indices = @transform_4, window_bounds = array<i64: 1, 4, 128>}, {transform_indices = @transform_5, window_bounds = array<i64: 1, 32, 1>}, {transform_indices = @transform_6, window_bounds = array<i64: 1, 1, 1>}]} {
    %c0 = arith.constant 0 : index
    %c0_0 = arith.constant 0 : index
    %c0_1 = arith.constant 0 : index
    %0 = vector.load %arg5[%c0, %c0_0, %c0_1] : memref<1x4x128xf32, #tpu.memory_space<vmem>>, vector<1x4x128xf32>
    %1 = vector.shape_cast %0 : vector<1x4x128xf32> to vector<4x128xf32>
    %c0_2 = arith.constant 0 : index
    %c0_3 = arith.constant 0 : index
    %2 = vector.load %arg2[%c0_2, %c0_3] : memref<32x4xf32, #tpu.memory_space<vmem>>, vector<32x4xf32>
    %3 = arith.mulf %1, %1 : vector<4x128xf32>
    %cst = arith.constant dense<0.000000e+00> : vector<128xf32>
    %4 = vector.multi_reduction <add>, %3, %cst [0] : vector<4x128xf32> to vector<128xf32>
    %5 = vector.shape_cast %4 : vector<128xf32> to vector<1x128xf32>
    %cst_4 = arith.constant dense<0.000000e+00> : vector<32x128xf32>
    %6 = tpu.matmul %2, %1, %cst_4 {dimension_numbers = #tpu.dot_dimension_numbers<[1], [0], [0], [1], [0, 0, 1, 1], [], []>} : vector<32x4xf32>, vector<4x128xf32>, vector<32x128xf32> -> vector<32x128xf32>
    %c0_5 = arith.constant 0 : index
    %c0_6 = arith.constant 0 : index
    %7 = vector.load %arg4[%c0_5, %c0_6] : memref<32x1xf32, #tpu.memory_space<vmem>>, vector<32x1xf32>
    %8 = vector.broadcast %5 : vector<1x128xf32> to vector<32x128xf32>
    %9 = vector.broadcast %7 : vector<32x1xf32> to vector<32x128xf32>
    %10 = arith.addf %8, %9 : vector<32x128xf32>
    %cst_7 = arith.constant 2.000000e+00 : f32
    %11 = vector.broadcast %cst_7 : f32 to vector<32x128xf32>
    %12 = arith.mulf %11, %6 : vector<32x128xf32>
    %13 = arith.subf %10, %12 : vector<32x128xf32>
    %cst_8 = arith.constant dense<0x7F800000> : vector<128xf32>
    %14 = vector.multi_reduction <minimumf>, %13, %cst_8 [0] : vector<32x128xf32> to vector<128xf32>
    %15 = vector.shape_cast %14 : vector<128xf32> to vector<1x128xf32>
    %16 = tpu.iota {dimensions = array<i32: 0>} : vector<32x128xi32>
    %17 = arith.sitofp %16 : vector<32x128xi32> to vector<32x128xf32>
    %18 = vector.broadcast %15 : vector<1x128xf32> to vector<32x128xf32>
    %19 = arith.cmpf ole, %13, %18 : vector<32x128xf32>
    %cst_9 = arith.constant 3.200000e+01 : f32
    %20 = vector.broadcast %cst_9 : f32 to vector<32x128xf32>
    %21 = arith.select %19, %17, %20 : vector<32x128xi1>, vector<32x128xf32>
    %cst_10 = arith.constant dense<0x7F800000> : vector<128xf32>
    %22 = vector.multi_reduction <minimumf>, %21, %cst_10 [0] : vector<32x128xf32> to vector<128xf32>
    %23 = vector.shape_cast %22 : vector<128xf32> to vector<1x128xf32>
    %24 = vector.broadcast %23 : vector<1x128xf32> to vector<32x128xf32>
    %25 = arith.cmpf oeq, %17, %24 : vector<32x128xf32>
    %26 = arith.extui %25 : vector<32x128xi1> to vector<32x128xi32>
    %27 = arith.sitofp %26 : vector<32x128xi32> to vector<32x128xf32>
    %c0_11 = arith.constant 0 : index
    %c0_12 = arith.constant 0 : index
    %28 = vector.load %arg3[%c0_11, %c0_12] : memref<4x32xf32, #tpu.memory_space<vmem>>, vector<4x32xf32>
    %cst_13 = arith.constant dense<0.000000e+00> : vector<4x128xf32>
    %29 = tpu.matmul %28, %27, %cst_13 {dimension_numbers = #tpu.dot_dimension_numbers<[1], [0], [0], [1], [0, 0, 1, 1], [], []>} : vector<4x32xf32>, vector<32x128xf32>, vector<4x128xf32> -> vector<4x128xf32>
    %c0_14 = arith.constant 0 : index
    %c0_15 = arith.constant 0 : index
    %c0_16 = arith.constant 0 : index
    %30 = vector.load %arg6[%c0_14, %c0_15, %c0_16] : memref<1x4x128xf32, #tpu.memory_space<vmem>>, vector<1x4x128xf32>
    %31 = vector.shape_cast %30 : vector<1x4x128xf32> to vector<4x128xf32>
    %32 = vector.shape_cast %29 : vector<4x128xf32> to vector<1x4x128xf32>
    tpu.vector_store %arg6[%c0_14, %c0_15, %c0_16], %32 {strides = array<i32>} : memref<1x4x128xf32, #tpu.memory_space<vmem>>, vector<1x4x128xf32>,
    %c0_i32 = arith.constant 0 : i32
    %33 = arith.cmpi eq, %arg1, %c0_i32 : i32
    %34 = arith.extui %33 : i1 to i32
    %c0_i32_17 = arith.constant 0 : i32
    %35 = arith.cmpi ne, %34, %c0_i32_17 : i32
    scf.if %35 {
      %cst_32 = arith.constant 0.000000e+00 : f32
      %57 = vector.broadcast %cst_32 : f32 to vector<1x32x1xf32>
      %c0_33 = arith.constant 0 : index
      %c0_34 = arith.constant 0 : index
      %c0_35 = arith.constant 0 : index
      %58 = vector.load %arg7[%c0_33, %c0_34, %c0_35] : memref<1x32x1xf32, #tpu.memory_space<vmem>>, vector<1x32x1xf32>
      tpu.vector_store %arg7[%c0_33, %c0_34, %c0_35], %57 {strides = array<i32>} : memref<1x32x1xf32, #tpu.memory_space<vmem>>, vector<1x32x1xf32>,
      %cst_36 = arith.constant 0.000000e+00 : f32
      %59 = vector.broadcast %cst_36 : f32 to vector<1x1x1xf32>
      %c0_37 = arith.constant 0 : index
      %c0_38 = arith.constant 0 : index
      %c0_39 = arith.constant 0 : index
      %60 = vector.load %arg8[%c0_37, %c0_38, %c0_39] : memref<1x1x1xf32, #tpu.memory_space<vmem>>, vector<1x1x1xf32>
      tpu.vector_store %arg8[%c0_37, %c0_38, %c0_39], %59 {strides = array<i32>} : memref<1x1x1xf32, #tpu.memory_space<vmem>>, vector<1x1x1xf32>,
    } else {
    }
    %c0_18 = arith.constant 0 : index
    %c0_19 = arith.constant 0 : index
    %c0_20 = arith.constant 0 : index
    %36 = vector.load %arg7[%c0_18, %c0_19, %c0_20] : memref<1x32x1xf32, #tpu.memory_space<vmem>>, vector<1x32x1xf32>
    %37 = vector.shape_cast %36 : vector<1x32x1xf32> to vector<32x1xf32>
    %cst_21 = arith.constant dense<0.000000e+00> : vector<32xf32>
    %38 = vector.multi_reduction <add>, %27, %cst_21 [1] : vector<32x128xf32> to vector<32xf32>
    %39 = vector.shape_cast %38 : vector<32xf32> to vector<32x1xf32>
    %40 = arith.addf %37, %39 : vector<32x1xf32>
    %c0_22 = arith.constant 0 : index
    %c0_23 = arith.constant 0 : index
    %c0_24 = arith.constant 0 : index
    %41 = vector.load %arg7[%c0_22, %c0_23, %c0_24] : memref<1x32x1xf32, #tpu.memory_space<vmem>>, vector<1x32x1xf32>
    %42 = vector.shape_cast %41 : vector<1x32x1xf32> to vector<32x1xf32>
    %43 = vector.shape_cast %40 : vector<32x1xf32> to vector<1x32x1xf32>
    tpu.vector_store %arg7[%c0_22, %c0_23, %c0_24], %43 {strides = array<i32>} : memref<1x32x1xf32, #tpu.memory_space<vmem>>, vector<1x32x1xf32>,
    %44 = arith.subf %29, %1 : vector<4x128xf32>
    %c0_25 = arith.constant 0 : index
    %c0_26 = arith.constant 0 : index
    %c0_27 = arith.constant 0 : index
    %45 = vector.load %arg8[%c0_25, %c0_26, %c0_27] : memref<1x1x1xf32, #tpu.memory_space<vmem>>, vector<1x1x1xf32>
    %46 = vector.shape_cast %45 : vector<1x1x1xf32> to vector<1x1xf32>
    %47 = arith.mulf %44, %44 : vector<4x128xf32>
    %48 = vector.shape_cast %47 : vector<4x128xf32> to vector<1x4x128xf32>
    %cst_28 = arith.constant dense<0.000000e+00> : vector<1xf32>
    %49 = vector.multi_reduction <add>, %48, %cst_28 [1, 2] : vector<1x4x128xf32> to vector<1xf32>
    %50 = vector.shape_cast %49 : vector<1xf32> to vector<1x1x1xf32>
    %51 = vector.extract %50[0, 0, 0] : f32 from vector<1x1x1xf32>
    %52 = vector.broadcast %51 : f32 to vector<1x1xf32>
    %53 = arith.addf %46, %52 : vector<1x1xf32>
    %c0_29 = arith.constant 0 : index
    %c0_30 = arith.constant 0 : index
    %c0_31 = arith.constant 0 : index
    %54 = vector.load %arg8[%c0_29, %c0_30, %c0_31] : memref<1x1x1xf32, #tpu.memory_space<vmem>>, vector<1x1x1xf32>
    %55 = vector.shape_cast %54 : vector<1x1x1xf32> to vector<1x1xf32>
    %56 = vector.shape_cast %53 : vector<1x1xf32> to vector<1x1x1xf32>
    tpu.vector_store %arg8[%c0_29, %c0_30, %c0_31], %56 {strides = array<i32>} : memref<1x1x1xf32, #tpu.memory_space<vmem>>, vector<1x1x1xf32>,
    return
  }
  func.func @transform_0(%arg0: i32, %arg1: i32) -> (i32, i32) {
    %c0_i32 = arith.constant 0 : i32
    %c0_i32_0 = arith.constant 0 : i32
    %c0_i32_1 = arith.constant 0 : i32
    return %c0_i32, %c0_i32_0 : i32, i32
  }
  func.func @transform_1(%arg0: i32, %arg1: i32) -> (i32, i32) {
    %c0_i32 = arith.constant 0 : i32
    %c0_i32_0 = arith.constant 0 : i32
    %c0_i32_1 = arith.constant 0 : i32
    return %c0_i32, %c0_i32_0 : i32, i32
  }
  func.func @transform_2(%arg0: i32, %arg1: i32) -> (i32, i32) {
    %c0_i32 = arith.constant 0 : i32
    %c0_i32_0 = arith.constant 0 : i32
    %c0_i32_1 = arith.constant 0 : i32
    return %c0_i32, %c0_i32_0 : i32, i32
  }
  func.func @transform_3(%arg0: i32, %arg1: i32) -> (i32, i32, i32) {
    %c0_i32 = arith.constant 0 : i32
    %c0_i32_0 = arith.constant 0 : i32
    return %arg0, %c0_i32, %arg1 : i32, i32, i32
  }
  func.func @transform_4(%arg0: i32, %arg1: i32) -> (i32, i32, i32) {
    %c0_i32 = arith.constant 0 : i32
    %c0_i32_0 = arith.constant 0 : i32
    return %arg0, %c0_i32, %arg1 : i32, i32, i32
  }
  func.func @transform_5(%arg0: i32, %arg1: i32) -> (i32, i32, i32) {
    %c0_i32 = arith.constant 0 : i32
    %c0_i32_0 = arith.constant 0 : i32
    %c0_i32_1 = arith.constant 0 : i32
    return %arg0, %c0_i32, %c0_i32_0 : i32, i32, i32
  }
  func.func @transform_6(%arg0: i32, %arg1: i32) -> (i32, i32, i32) {
    %c0_i32 = arith.constant 0 : i32
    %c0_i32_0 = arith.constant 0 : i32
    %c0_i32_1 = arith.constant 0 : i32
    return %arg0, %c0_i32, %c0_i32_0 : i32, i32, i32
  }
}

</mosaic_0001>

<llo_original>
// kernel: tpu_custom_call.1
$region0: #{tpu_custom_call.1}
  #allocation0 [shape = 'u32[]', space=smem, size = 0x4, offset = 0x4, fixed_abs, tag = 'smem constant byte address 0x4 - core index']
  #allocation1 [shape = 'u32[144,128]{1,0:T(1,128)}', space=vmem, size = 0x12000, scoped, tag = 'internal scratch']
  %s0 = inlined_call_operand.vmem [shape: f32[32,4], index: 0, kind: input, shape index: {}]
  %s1 = inlined_call_operand.vmem [shape: f32[4,32], index: 1, kind: input, shape index: {}]
  %s2 = inlined_call_operand.vmem [shape: f32[32,1], index: 2, kind: input, shape index: {}]
  %s3 = inlined_call_operand.vmem [shape: f32[2,4,256], index: 3, kind: input, shape index: {}]
  %s4 = inlined_call_operand.hbm [shape: f32[2,4,256], index: 4, kind: output, shape index: {0}]
  %s5 = inlined_call_operand.vmem [shape: f32[2,32,1], index: 5, kind: output, shape index: {1}]
  %s6 = inlined_call_operand.vmem [shape: f32[2,1,1], index: 6, kind: output, shape index: {2}]
  %7 = xla_tuple %s4, %s5, %s6
  %s8 = sld [smem:[#allocation0]]
  $region69: #{tpu_custom_call.1} parent=0
    _
  %s10 = ssub.s32 1, %s8
  %s11 = scalar_select 0, %s10, %s8
  $region1: #{tpu_custom_call.1} parent=0
    #allocation2 [shape = 'u8[4096]{0}', space=vmem, size = 0x1000, scoped, tag = 'output window, operand 0']
    #allocation3 [shape = 's32[2]{0}', space=sflag, size = 0x8, scoped, tag = 'scoped memory for tpu_custom_call.1']
    %12 = vsyncpa [#allocation3], 0
    %s13 = scalar_lea.sflag [#allocation3], 1
    %14 = vsyncpa %s13, 0
    loop: start=0, step=1, limit=6
    $region2: #{tpu_custom_call.1} parent=1 // loop_pre_header
      _
    $region3: #{tpu_custom_call.1} parent=1 // loop_header
      %s16 = sphi 0, %s20
      %p17 = scmp.ge.s32.totalorder %s16, 6
      %s23 = sphi 0, %s35
      %s24 = sphi 0, %s31
      %s25 = sphi 0, %s23
      %s26 = sphi 0, %s24
      %s27 = sphi 0, %s25
      %s28 = sphi 0, %s26
      %s36 = sphi 0, %s36
      %s38 = sphi 0, %s36
      %s39 = sphi 0, %s38
      %s53 = sphi 0, %s39
      %s57 = sphi 0, %s57
      %s59 = sphi 0, %s57
      %s60 = sphi 0, %s59
      %s74 = sphi 0, %s60
      %s78 = sphi 0, %s78
      %s80 = sphi 0, %s78
      %s81 = sphi 0, %s80
      %s95 = sphi 0, %s81
      %s103 = sphi 0, %s105
      %s106 = sphi 0, %s103
      %s107 = sphi 0, %s106
      %s123 = sphi 0, %s107
      %s131 = sphi 0, %s133
      %s134 = sphi 0, %s131
      %s135 = sphi 0, %s134
      %s151 = sphi 0, %s135
      %s157 = sphi 0, %s159
      %s160 = sphi 0, %s157
      %s161 = sphi 0, %s160
      %s177 = sphi 0, %s161
      %s183 = sphi 0, %s185
      %s186 = sphi 0, %s183
      %s187 = sphi 0, %s186
      %s203 = sphi 0, %s187
    $region4: #{tpu_custom_call.1} parent=1 // loop_header_branch
      %19 = sbr.rel (%p17) target = $region8
    $region5: #{tpu_custom_call.1} parent=1 // loop_body
      %s21 = ssub.s32 %s16, 1
      %s22 = ssub.s32 %s16, 2
      %s29 = sadd.s32 1, %s24
      %p30 = scmp.ge.s32.totalorder %s29, 2
      %s31 = scalar_select %p30, 0, %s29
      %s32 = sadd.s32 1, %s23
      %s33 = scalar_select %p30, %s32, %s23
      %p34 = scmp.ge.s32.totalorder %s33, 2
      %s35 = scalar_select %p34, 0, %s33
      %s37 = sadd.s32 %s36, 1
      %p40 = scmp.eq.s32.totalorder %s16, 3
      %p41 = scmp.ne.s32.totalorder %s36, %s38
      %p42 = scmp.eq.s32.totalorder %s16, 0
      %p43 = por %p41, %p42
      %p44 = scmp.ne.s32.totalorder %s36, %s38
      %p45 = scmp.eq.s32.totalorder %s21, 3
      %p46 = por %p44, %p45
      %p47 = scmp.ne.s32.totalorder %s38, %s39
      %p48 = scmp.eq.s32.totalorder %s21, 0
      %p49 = por %p47, %p48
      %p50 = scmp.ne.s32.totalorder %s38, %s39
      %p51 = scmp.eq.s32.totalorder %s22, 3
      %p52 = por %p50, %p51
      %p54 = scmp.ne.s32.totalorder %s39, %s53
      %p55 = scmp.eq.s32.totalorder %s22, 0
      %p56 = por %p54, %p55
      %s58 = sadd.s32 %s57, 1
      %p61 = scmp.eq.s32.totalorder %s16, 3
      %p62 = scmp.ne.s32.totalorder %s57, %s59
      %p63 = scmp.eq.s32.totalorder %s16, 0
      %p64 = por %p62, %p63
      %p65 = scmp.ne.s32.totalorder %s57, %s59
      %p66 = scmp.eq.s32.totalorder %s21, 3
      %p67 = por %p65, %p66
      %p68 = scmp.ne.s32.totalorder %s59, %s60
      %p69 = scmp.eq.s32.totalorder %s21, 0
      %p70 = por %p68, %p69
      %p71 = scmp.ne.s32.totalorder %s59, %s60
      %p72 = scmp.eq.s32.totalorder %s22, 3
      %p73 = por %p71, %p72
      %p75 = scmp.ne.s32.totalorder %s60, %s74
      %p76 = scmp.eq.s32.totalorder %s22, 0
      %p77 = por %p75, %p76
      %s79 = sadd.s32 %s78, 1
      %p82 = scmp.eq.s32.totalorder %s16, 3
      %p83 = scmp.ne.s32.totalorder %s78, %s80
      %p84 = scmp.eq.s32.totalorder %s16, 0
      %p85 = por %p83, %p84
      %p86 = scmp.ne.s32.totalorder %s78, %s80
      %p87 = scmp.eq.s32.totalorder %s21, 3
      %p88 = por %p86, %p87
      %p89 = scmp.ne.s32.totalorder %s80, %s81
      %p90 = scmp.eq.s32.totalorder %s21, 0
      %p91 = por %p89, %p90
      %p92 = scmp.ne.s32.totalorder %s80, %s81
      %p93 = scmp.eq.s32.totalorder %s22, 3
      %p94 = por %p92, %p93
      %p96 = scmp.ne.s32.totalorder %s81, %s95
      %p97 = scmp.eq.s32.totalorder %s22, 0
      %p98 = por %p96, %p97
      %s99 = ssub.s32 %s23, %s35
      %s100 = ssub.s32 %s24, %s31
      %s101 = sor.u32 %s99, %s100
      %p102 = scmp.eq.s32.totalorder %s101, 0
      %s104 = sadd.s32 %s103, 1
      %s105 = scalar_select %p102, %s103, %s104
      %p108 = pneg %p102
      %p109 = scmp.eq.s32.totalorder %s16, 3
      %p110 = por %p108, %p109
      %p111 = scmp.ne.s32.totalorder %s103, %s106
      %p112 = scmp.eq.s32.totalorder %s16, 0
      %p113 = por %p111, %p112
      %p114 = scmp.ne.s32.totalorder %s103, %s106
      %p115 = scmp.eq.s32.totalorder %s21, 3
      %p116 = por %p114, %p115
      %p117 = scmp.ne.s32.totalorder %s106, %s107
      %p118 = scmp.eq.s32.totalorder %s21, 0
      %p119 = por %p117, %p118
      %p120 = scmp.ne.s32.totalorder %s106, %s107
      %p121 = scmp.eq.s32.totalorder %s22, 3
      %p122 = por %p120, %p121
      %p124 = scmp.ne.s32.totalorder %s107, %s123
      %p125 = scmp.eq.s32.totalorder %s22, 0
      %p126 = por %p124, %p125
      %s127 = ssub.s32 %s23, %s35
      %s128 = ssub.s32 %s24, %s31
      %s129 = sor.u32 %s127, %s128
      %p130 = scmp.eq.s32.totalorder %s129, 0
      %s132 = sadd.s32 %s131, 1
      %s133 = scalar_select %p130, %s131, %s132
      %p136 = pneg %p130
      %p137 = scmp.eq.s32.totalorder %s16, 3
      %p138 = por %p136, %p137
      %p139 = scmp.ne.s32.totalorder %s131, %s134
      %p140 = scmp.eq.s32.totalorder %s16, 0
      %p141 = por %p139, %p140
      %p142 = scmp.ne.s32.totalorder %s131, %s134
      %p143 = scmp.eq.s32.totalorder %s21, 3
      %p144 = por %p142, %p143
      %p145 = scmp.ne.s32.totalorder %s134, %s135
      %p146 = scmp.eq.s32.totalorder %s21, 0
      %p147 = por %p145, %p146
      %p148 = scmp.ne.s32.totalorder %s134, %s135
      %p149 = scmp.eq.s32.totalorder %s22, 3
      %p150 = por %p148, %p149
      %p152 = scmp.ne.s32.totalorder %s135, %s151
      %p153 = scmp.eq.s32.totalorder %s22, 0
      %p154 = por %p152, %p153
      %s155 = ssub.s32 %s23, %s35
      %p156 = scmp.eq.s32.totalorder %s155, 0
      %s158 = sadd.s32 %s157, 1
      %s159 = scalar_select %p156, %s157, %s158
      %p162 = pneg %p156
      %p163 = scmp.eq.s32.totalorder %s16, 3
      %p164 = por %p162, %p163
      %p165 = scmp.ne.s32.totalorder %s157, %s160
      %p166 = scmp.eq.s32.totalorder %s16, 0
      %p167 = por %p165, %p166
      %p168 = scmp.ne.s32.totalorder %s157, %s160
      %p169 = scmp.eq.s32.totalorder %s21, 3
      %p170 = por %p168, %p169
      %p171 = scmp.ne.s32.totalorder %s160, %s161
      %p172 = scmp.eq.s32.totalorder %s21, 0
      %p173 = por %p171, %p172
      %p174 = scmp.ne.s32.totalorder %s160, %s161
      %p175 = scmp.eq.s32.totalorder %s22, 3
      %p176 = por %p174, %p175
      %p178 = scmp.ne.s32.totalorder %s161, %s177
      %p179 = scmp.eq.s32.totalorder %s22, 0
      %p180 = por %p178, %p179
      %s181 = ssub.s32 %s23, %s35
      %p182 = scmp.eq.s32.totalorder %s181, 0
      %s184 = sadd.s32 %s183, 1
      %s185 = scalar_select %p182, %s183, %s184
      %p188 = pneg %p182
      %p189 = scmp.eq.s32.totalorder %s16, 3
      %p190 = por %p188, %p189
      %p191 = scmp.ne.s32.totalorder %s183, %s186
      %p192 = scmp.eq.s32.totalorder %s16, 0
      %p193 = por %p191, %p192
      %p194 = scmp.ne.s32.totalorder %s183, %s186
      %p195 = scmp.eq.s32.totalorder %s21, 3
      %p196 = por %p194, %p195
      %p197 = scmp.ne.s32.totalorder %s186, %s187
      %p198 = scmp.eq.s32.totalorder %s21, 0
      %p199 = por %p197, %p198
      %p200 = scmp.ne.s32.totalorder %s186, %s187
      %p201 = scmp.eq.s32.totalorder %s22, 3
      %p202 = por %p200, %p201
      %p204 = scmp.ne.s32.totalorder %s187, %s203
      %p205 = scmp.eq.s32.totalorder %s22, 0
      %p206 = por %p204, %p205
      %p207 = scmp.le.s32.totalorder 1, %s16
      %p208 = scmp.lt.s32.totalorder %s16, 5
      %p209 = pnand %p207, %p208
      %p210 = pneg %p209
      // Predicated region
      $region9: #{tpu_custom_call.1} parent=5 // pred_check
        _
      $region10: #{tpu_custom_call.1} parent=5 // pred_check_branch
        %212 = sbr.rel (%p209) target = $region12
      $region11: #{tpu_custom_call.1} parent=5 // pred_region
        %s213 = ssub.s32 %s16, 1
        // Predicated region
        $region13: #{tpu_custom_call.1} parent=11 // pred_check
          %p214 = pneg %p49
        $region14: #{tpu_custom_call.1} parent=11 // pred_check_branch
          %216 = sbr.rel (%p214) target = $region16
        $region15: #{tpu_custom_call.1} parent=11 // pred_region
          _
        $region16: #{tpu_custom_call.1} parent=11 // pred_fallthru
          _
        // Predicated region
        $region17: #{tpu_custom_call.1} parent=11 // pred_check
          %p217 = pneg %p70
        $region18: #{tpu_custom_call.1} parent=11 // pred_check_branch
          %219 = sbr.rel (%p217) target = $region20
        $region19: #{tpu_custom_call.1} parent=11 // pred_region
          _
        $region20: #{tpu_custom_call.1} parent=11 // pred_fallthru
          _
        // Predicated region
        $region21: #{tpu_custom_call.1} parent=11 // pred_check
          %p220 = pneg %p91
        $region22: #{tpu_custom_call.1} parent=11 // pred_check_branch
          %222 = sbr.rel (%p220) target = $region24
        $region23: #{tpu_custom_call.1} parent=11 // pred_region
          _
        $region24: #{tpu_custom_call.1} parent=11 // pred_fallthru
          _
      $region12: #{tpu_custom_call.1} parent=5 // pred_fallthru
        _
      %p223 = scmp.lt.s32.totalorder %s16, 4
      // Predicated region
      $region25: #{tpu_custom_call.1} parent=5 // pred_check
        %p224 = pneg %p223
      $region26: #{tpu_custom_call.1} parent=5 // pred_check_branch
        %226 = sbr.rel (%p224) target = $region28
      $region27: #{tpu_custom_call.1} parent=5 // pred_region
        // Predicated region
        $region29: #{tpu_custom_call.1} parent=27 // pred_check
          %p227 = pneg %p113
        $region30: #{tpu_custom_call.1} parent=27 // pred_check_branch
          %229 = sbr.rel (%p227) target = $region32
        $region31: #{tpu_custom_call.1} parent=27 // pred_region
          %p230 = scmp.lt.s32.totalorder %s23, 1
          %s231 = scalar_select %p230, %s23, 1
          %p232 = scmp.lt.s32.totalorder %s24, 1
          %s233 = scalar_select %p232, %s24, 1
          %s234 = smul.addr %s231, 2
          %s235 = sadd.s32 %s233, %s234
          %s236 = smul.addr %s235, 4
          %s237 = scalar_lea.vmem %s3, %s236
        $region32: #{tpu_custom_call.1} parent=27 // pred_fallthru
          _
      $region28: #{tpu_custom_call.1} parent=5 // pred_fallthru
        _
      %p238 = scmp.le.s32.totalorder 1, %s16
      %p239 = scmp.lt.s32.totalorder %s16, 5
      %p240 = pnand %p238, %p239
      %p241 = pneg %p240
      // Predicated region
      $region33: #{tpu_custom_call.1} parent=5 // pred_check
        _
      $region34: #{tpu_custom_call.1} parent=5 // pred_check_branch
        %243 = sbr.rel (%p240) target = $region36
      $region35: #{tpu_custom_call.1} parent=5 // pred_region
        %s244 = ssub.s32 %s16, 1
        %p245 = pneg %p49
        %p246 = pneg %p46
        %p247 = pneg %p70
        %p248 = pneg %p67
        %p249 = pneg %p91
        %p250 = pneg %p88
        %p251 = scmp.lt.s32.totalorder %s25, 1
        %s252 = scalar_select %p251, %s25, 1
        %p253 = scmp.lt.s32.totalorder %s26, 1
        %s254 = scalar_select %p253, %s26, 1
        %s255 = smul.addr %s252, 2
        %s256 = sadd.s32 %s254, %s255
        %s257 = smul.addr %s256, 4
        %s258 = scalar_lea.vmem %s3, %s257
        %p259 = pneg %p119
        %p260 = pneg %p116
        %p261 = pneg %p147
        %p262 = pneg %p144
        %s263 = sand.u32 %s134, 1
        %s264 = scalar_lea.sflag [#allocation3], %s263
        %s265 = sand.u32 %s134, 1
        %s266 = smul.addr %s265, 4
        %s267 = scalar_lea.vmem [#allocation2], %s266
        %p268 = pneg %p173
        %p269 = pneg %p170
        %p270 = scmp.lt.s32.totalorder %s25, 1
        %s271 = scalar_select %p270, %s25, 1
        %s272 = smul.addr %s271, 4
        %s273 = smul.addr %s272, 8
        %s274 = scalar_lea.vmem %s5, %s273
        %p275 = pneg %p199
        %p276 = pneg %p196
        %p277 = scmp.lt.s32.totalorder %s25, 1
        %s278 = scalar_select %p277, %s25, 1
        %s279 = scalar_lea.vmem %s6, %s278
        %p280 = scmp.lt.s32.totalorder %s25, 1
        %s281 = scalar_select %p280, %s25, 1
        %p282 = scmp.lt.s32.totalorder %s26, 1
        %s283 = scalar_select %p282, %s26, 1
        %s284 = smul.addr %s281, 2
        %s285 = sadd.s32 %s283, %s284
        %s286 = smul.addr %s285, 4
        %s287 = scalar_lea.vmem %s3, %s286
        %p288 = scmp.lt.s32.totalorder %s25, 1
        %s289 = scalar_select %p288, %s25, 1
        %s290 = smul.addr %s289, 4
        %s291 = smul.addr %s290, 8
        %s292 = scalar_lea.vmem %s5, %s291
        %p293 = scmp.lt.s32.totalorder %s25, 1
        %s294 = scalar_select %p293, %s25, 1
        %s295 = scalar_lea.vmem %s6, %s294
        %v296 = vld [vmem:[%s287] sm:$0xf]
        %v297 = vld [vmem:[%s0] sm:$0xff]
        %v298 = vld [vmem:[%s0 + $0x8] sm:$0xff]
        %v299 = vld [vmem:[%s0 + $0x10] sm:$0xff]
        %v300 = vld [vmem:[%s0 + $0x18] sm:$0xff]
        %v301 = vmul.f32 %v296, %v296
        %vm302 = vcmask 1043456
        %v303 = vsel %vm302, %v301, 0.0
        %v304 = vrot.slane %v303, 4
        %v305 = vadd.f32 %v303, %v304
        %v306 = vrot.slane %v305, 2
        %v307 = vadd.f32 %v305, %v306
        %v308 = vrot.slane %v307, 1
        %v309 = vadd.f32 %v307, %v308
        %vm310 = vcmask 31744
        %v312 = vsel %vm310, %v297, 0
        %v315 = vsel %vm310, %v298, 0
        %v318 = vsel %vm310, %v299, 0
        %v321 = vsel %vm310, %v300, 0
        %v324 = vsel %vm302, %v296, 0
        %326 = vmatprep.subr.mxu0 0.0
        %327 = vmatpush1.msra.mxu0 %v324
        %328 = vmatprep.subr.mxu0 0.0
        %329 = vmatpush1.msra.mxu0 0.0
        %330 = vmatprep.subr.mxu0 0.0
        %331 = vmatpush1.msra.mxu0 0.0
        %332 = vmatprep.subr.mxu0 0.0
        %333 = vmatpush1.msra.mxu0 0.0
        %334 = vmatprep.subr.mxu0 0.0
        %335 = vmatpush1.msra.mxu0 0.0
        %336 = vmatprep.subr.mxu0 0.0
        %337 = vmatpush1.msra.mxu0 0.0
        %338 = vmatprep.subr.mxu0 0.0
        %339 = vmatpush1.msra.mxu0 0.0
        %340 = vmatprep.subr.mxu0 0.0
        %341 = vmatpush1.msra.mxu0 0.0
        %342 = vmatprep.subr.mxu0 0.0
        %343 = vmatpush1.msra.mxu0 0.0
        %344 = vmatprep.subr.mxu0 0.0
        %345 = vmatpush1.msra.mxu0 0.0
        %346 = vmatprep.subr.mxu0 0.0
        %347 = vmatpush1.msra.mxu0 0.0
        %348 = vmatprep.subr.mxu0 0.0
        %349 = vmatpush1.msra.mxu0 0.0
        %350 = vmatprep.subr.mxu0 0.0
        %351 = vmatpush1.msra.mxu0 0.0
        %352 = vmatprep.subr.mxu0 0.0
        %353 = vmatpush1.msra.mxu0 0.0
        %354 = vmatprep.subr.mxu0 0.0
        %355 = vmatpush1.msra.mxu0 0.0
        %356 = vmatprep.subr.mxu0 0.0
        %357 = vmatpush1.msra.mxu0 0.0
        %358 = vmatprep.subr.mxu0 0.0
        %359 = vmatpush1.msra.mxu0 0.0
        %360 = vmatprep.subr.mxu0 0.0
        %361 = vmatpush1.msra.mxu0 0.0
        %362 = vmatprep.subr.mxu0 0.0
        %363 = vmatpush1.msra.mxu0 0.0
        %364 = vmatprep.subr.mxu0 0.0
        %365 = vmatpush1.msra.mxu0 0.0
        %366 = vmatprep.subr.mxu0 0.0
        %367 = vmatpush1.msra.mxu0 0.0
        %368 = vmatprep.subr.mxu0 0.0
        %369 = vmatpush1.msra.mxu0 0.0
        %370 = vmatprep.subr.mxu0 0.0
        %371 = vmatpush1.msra.mxu0 0.0
        %372 = vmatprep.subr.mxu0 0.0
        %373 = vmatpush1.msra.mxu0 0.0
        %374 = vmatprep.subr.mxu0 0.0
        %375 = vmatpush1.msra.mxu0 0.0
        %376 = vmatprep.subr.mxu0 0.0
        %377 = vmatpush1.msra.mxu0 0.0
        %378 = vmatprep.subr.mxu0 0.0
        %379 = vmatpush1.msra.mxu0 0.0
        %380 = vmatprep.subr.mxu0 0.0
        %381 = vmatpush1.msra.mxu0 0.0
        %382 = vmatprep.subr.mxu0 0.0
        %383 = vmatpush1.msra.mxu0 0.0
        %384 = vmatprep.subr.mxu0 0.0
        %385 = vmatpush1.msra.mxu0 0.0
        %386 = vmatprep.subr.mxu0 0.0
        %387 = vmatpush1.msra.mxu0 0.0
        %388 = vmatprep.subr.mxu0 0.0
        %389 = vmatpush1.msra.mxu0 0.0
        %390 = vmatprep.mubr.f32.mxu0 0.0
        %391 = vmatmul.mubr.f32.gmra.mrb[0].mxu0 %v312
        %v392 = vpop.f32.mrb[0].mxu0
        %v393 = vadd.f32 0.0, %v392
        %v394 = vpop.f32.mrb[0].mxu0
        %395 = vmatprep.mubr.f32.mxu0 0.0
        %396 = vmatmul.mubr.f32.gmra.mrb[0].mxu0 %v315
        %v397 = vpop.f32.mrb[0].mxu0
        %v398 = vadd.f32 0.0, %v397
        %v399 = vpop.f32.mrb[0].mxu0
        %400 = vmatprep.mubr.f32.mxu0 0.0
        %401 = vmatmul.mubr.f32.gmra.mrb[0].mxu0 %v318
        %v402 = vpop.f32.mrb[0].mxu0
        %v403 = vadd.f32 0.0, %v402
        %v404 = vpop.f32.mrb[0].mxu0
        %405 = vmatprep.mubr.f32.mxu0 0.0
        %406 = vmatmul.mubr.f32.gmra.mrb[0].mxu0 %v321
        %v407 = vpop.f32.mrb[0].mxu0
        %v408 = vadd.f32 0.0, %v407
        %v409 = vpop.f32.mrb[0].mxu0
        %410 = vdwg.mxu0
        %v411 = vld [vmem:[%s2] sm:$0xff]
        %v412 = vld [vmem:[%s2 + $0x8] sm:$0xff]
        %v413 = vld [vmem:[%s2 + $0x10] sm:$0xff]
        %v414 = vld [vmem:[%s2 + $0x18] sm:$0xff]
        %416 = vset.pattern.permute.xlu0 0
        %417 = vperm.xlu0 %416, %v411
        %v418 = vpop.permute.xlu0 %417
        %421 = vset.pattern.permute.xlu0 0
        %422 = vperm.xlu0 %421, %v412
        %v423 = vpop.permute.xlu0 %422
        %426 = vset.pattern.permute.xlu0 0
        %427 = vperm.xlu0 %426, %v413
        %v428 = vpop.permute.xlu0 %427
        %431 = vset.pattern.permute.xlu0 0
        %432 = vperm.xlu0 %431, %v414
        %v433 = vpop.permute.xlu0 %432
        %v435 = vadd.f32 %v309, %v418
        %v436 = vadd.f32 %v309, %v423
        %v437 = vadd.f32 %v309, %v428
        %v438 = vadd.f32 %v309, %v433
        %v439 = vmul.f32 %v393, 2.0
        %v440 = vmul.f32 %v398, 2.0
        %v441 = vmul.f32 %v403, 2.0
        %v442 = vmul.f32 %v408, 2.0
        %v443 = vsub.f32 %v435, %v439
        %v444 = vsub.f32 %v436, %v440
        %v445 = vsub.f32 %v437, %v441
        %v446 = vsub.f32 %v438, %v442
        %v447 = vmin.f32 %v443, %v444
        %v448 = vmin.f32 %v445, %v446
        %v449 = vmin.f32 %v447, %v448
        %v450 = vrot.slane %v449, 4
        %v451 = vmin.f32 %v449, %v450
        %v452 = vrot.slane %v451, 2
        %v453 = vmin.f32 %v451, %v452
        %v454 = vrot.slane %v453, 1
        %v455 = vmin.f32 %v453, %v454
        %v456 = vlaneseq
        %v457 = vshrl.u32 %v456, 7
        %v458 = vadd.s32 %v457, 8
        %v459 = vadd.s32 %v457, 16
        %v460 = vadd.s32 %v457, 24
        %v461 = vcvt.s32.f32 %v457
        %v462 = vcvt.s32.f32 %v458
        %v463 = vcvt.s32.f32 %v459
        %v464 = vcvt.s32.f32 %v460
        %vm465 = vcmp.le.f32.partialorder %v443, %v455
        %vm466 = vcmp.le.f32.partialorder %v444, %v455
        %vm467 = vcmp.le.f32.partialorder %v445, %v455
        %vm468 = vcmp.le.f32.partialorder %v446, %v455
        %v469 = vsel %vm465, %v461, 32.0
        %v470 = vsel %vm466, %v462, 32.0
        %v471 = vsel %vm467, %v463, 32.0
        %v472 = vsel %vm468, %v464, 32.0
        %v473 = vmin.f32 %v469, %v470
        %v474 = vmin.f32 %v471, %v472
        %v475 = vmin.f32 %v473, %v474
        %v476 = vrot.slane %v475, 4
        %v477 = vmin.f32 %v475, %v476
        %v478 = vrot.slane %v477, 2
        %v479 = vmin.f32 %v477, %v478
        %v480 = vrot.slane %v479, 1
        %v481 = vmin.f32 %v479, %v480
        %vm482 = vcmp.eq.f32.partialorder %v461, %v481
        %vm483 = vcmp.eq.f32.partialorder %v462, %v481
        %vm484 = vcmp.eq.f32.partialorder %v463, %v481
        %vm485 = vcmp.eq.f32.partialorder %v464, %v481
        %v486 = vsel %vm482, 1, 0
        %v487 = vsel %vm483, 1, 0
        %v488 = vsel %vm484, 1, 0
        %v489 = vsel %vm485, 1, 0
        %v490 = vcvt.s32.f32 %v486
        %v491 = vcvt.s32.f32 %v487
        %v492 = vcvt.s32.f32 %v488
        %v493 = vcvt.s32.f32 %v489
        %v494 = vld [vmem:[%s1] sm:$0xf]
        %vm495 = vcmask 261120
        %v497 = vsel %vm495, %v494, 0
        %499 = vmatprep.subr.mxu0 0.0
        %500 = vmatpush1.msra.mxu0 %v490
        %501 = vmatprep.subr.mxu0 0.0
        %502 = vmatpush1.msra.mxu0 %v491
        %503 = vmatprep.subr.mxu0 0.0
        %504 = vmatpush1.msra.mxu0 %v492
        %505 = vmatprep.subr.mxu0 0.0
        %506 = vmatpush1.msra.mxu0 %v493
        %507 = vmatprep.subr.mxu0 0.0
        %508 = vmatpush1.msra.mxu0 0.0
        %509 = vmatprep.subr.mxu0 0.0
        %510 = vmatpush1.msra.mxu0 0.0
        %511 = vmatprep.subr.mxu0 0.0
        %512 = vmatpush1.msra.mxu0 0.0
        %513 = vmatprep.subr.mxu0 0.0
        %514 = vmatpush1.msra.mxu0 0.0
        %515 = vmatprep.subr.mxu0 0.0
        %516 = vmatpush1.msra.mxu0 0.0
        %517 = vmatprep.subr.mxu0 0.0
        %518 = vmatpush1.msra.mxu0 0.0
        %519 = vmatprep.subr.mxu0 0.0
        %520 = vmatpush1.msra.mxu0 0.0
        %521 = vmatprep.subr.mxu0 0.0
        %522 = vmatpush1.msra.mxu0 0.0
        %523 = vmatprep.subr.mxu0 0.0
        %524 = vmatpush1.msra.mxu0 0.0
        %525 = vmatprep.subr.mxu0 0.0
        %526 = vmatpush1.msra.mxu0 0.0
        %527 = vmatprep.subr.mxu0 0.0
        %528 = vmatpush1.msra.mxu0 0.0
        %529 = vmatprep.subr.mxu0 0.0
        %530 = vmatpush1.msra.mxu0 0.0
        %531 = vmatprep.subr.mxu0 0.0
        %532 = vmatpush1.msra.mxu0 0.0
        %533 = vmatprep.subr.mxu0 0.0
        %534 = vmatpush1.msra.mxu0 0.0
        %535 = vmatprep.subr.mxu0 0.0
        %536 = vmatpush1.msra.mxu0 0.0
        %537 = vmatprep.subr.mxu0 0.0
        %538 = vmatpush1.msra.mxu0 0.0
        %539 = vmatprep.subr.mxu0 0.0
        %540 = vmatpush1.msra.mxu0 0.0
        %541 = vmatprep.subr.mxu0 0.0
        %542 = vmatpush1.msra.mxu0 0.0
        %543 = vmatprep.subr.mxu0 0.0
        %544 = vmatpush1.msra.mxu0 0.0
        %545 = vmatprep.subr.mxu0 0.0
        %546 = vmatpush1.msra.mxu0 0.0
        %547 = vmatprep.subr.mxu0 0.0
        %548 = vmatpush1.msra.mxu0 0.0
        %549 = vmatprep.subr.mxu0 0.0
        %550 = vmatpush1.msra.mxu0 0.0
        %551 = vmatprep.subr.mxu0 0.0
        %552 = vmatpush1.msra.mxu0 0.0
        %553 = vmatprep.subr.mxu0 0.0
        %554 = vmatpush1.msra.mxu0 0.0
        %555 = vmatprep.subr.mxu0 0.0
        %556 = vmatpush1.msra.mxu0 0.0
        %557 = vmatprep.subr.mxu0 0.0
        %558 = vmatpush1.msra.mxu0 0.0
        %559 = vmatprep.subr.mxu0 0.0
        %560 = vmatpush1.msra.mxu0 0.0
        %561 = vmatprep.subr.mxu0 0.0
        %562 = vmatpush1.msra.mxu0 0.0
        %563 = vmatprep.mubr.f32.mxu0 0.0
        %564 = vmatmul.mubr.f32.gmra.mrb[0].mxu0 %v497
        %v565 = vpop.f32.mrb[0].mxu0
        %v566 = vadd.f32 0.0, %v565
        %v567 = vpop.f32.mrb[0].mxu0
        %568 = vdwg.mxu0
        %569 = vst [vmem:[%s267] sm:$0xf] %v566
        %p570 = scmp.eq.s32.totalorder %s26, 0
        // Predicated region
        $region37: #{tpu_custom_call.1} parent=35 // pred_check
          %p571 = pneg %p570
        $region38: #{tpu_custom_call.1} parent=35 // pred_check_branch
          %573 = sbr.rel (%p571) target = $region40
        $region39: #{tpu_custom_call.1} parent=35 // pred_region
          %vm574 = vcmask 7168
          %575 = vst.msk [vmem:[%s292] sm:$0xff] %vm574, 0.0
          %576 = vst.msk [vmem:[%s292 + $0x8] sm:$0xff] %vm574, 0.0
          %577 = vst.msk [vmem:[%s292 + $0x10] sm:$0xff] %vm574, 0.0
          %578 = vst.msk [vmem:[%s292 + $0x18] sm:$0xff] %vm574, 0.0
          %vm579 = vcmask 0
          %580 = vst.msk [vmem:[%s295] sm:$0x1] %vm579, 0.0
        $region40: #{tpu_custom_call.1} parent=35 // pred_fallthru
          _
        %v581 = vld [vmem:[%s292] sm:$0xff]
        %v582 = vld [vmem:[%s292 + $0x8] sm:$0xff]
        %v583 = vld [vmem:[%s292 + $0x10] sm:$0xff]
        %v584 = vld [vmem:[%s292 + $0x18] sm:$0xff]
        %585 = vadd.xlane.f32.xlu0 %v490
        %v586 = vpop.xlane.xlu0 %585
        %587 = vadd.xlane.f32.xlu0 %v491
        %v588 = vpop.xlane.xlu0 %587
        %589 = vadd.xlane.f32.xlu0 %v492
        %v590 = vpop.xlane.xlu0 %589
        %591 = vadd.xlane.f32.xlu0 %v493
        %v592 = vpop.xlane.xlu0 %591
        %v593 = vadd.f32 %v581, %v586
        %v594 = vadd.f32 %v582, %v588
        %v595 = vadd.f32 %v583, %v590
        %v596 = vadd.f32 %v584, %v592
        %vm597 = vcmask 7168
        %598 = vst.msk [vmem:[%s292] sm:$0xff] %vm597, %v593
        %599 = vst.msk [vmem:[%s292 + $0x8] sm:$0xff] %vm597, %v594
        %600 = vst.msk [vmem:[%s292 + $0x10] sm:$0xff] %vm597, %v595
        %601 = vst.msk [vmem:[%s292 + $0x18] sm:$0xff] %vm597, %v596
        %v602 = vsub.f32 %v566, %v296
        %v603 = vld [vmem:[%s295] sm:$0x1]
        %v604 = vmul.f32 %v602, %v602
        %v605 = vsel %vm302, %v604, 0.0
        %606 = vadd.xlane.f32.xlu0 %v605
        %v607 = vpop.xlane.xlu0 %606
        %v608 = vrot.slane %v607, 4
        %v609 = vadd.f32 %v607, %v608
        %v610 = vrot.slane %v609, 2
        %v611 = vadd.f32 %v609, %v610
        %v612 = vrot.slane %v611, 1
        %v613 = vadd.f32 %v611, %v612
        %s614 = vtos %v613
        %v615 = vstv %s614
        %v616 = vadd.f32 %v603, %v615
        %vm617 = vcmask 0
        %618 = vst.msk [vmem:[%s295] sm:$0x1] %vm617, %v616
        %s619 = sand.u32 %s134, 1
        %s620 = scalar_lea.sflag [#allocation3], %s619
        %s621 = sand.u32 %s134, 1
        %s622 = smul.addr %s621, 4
        %s623 = scalar_lea.vmem [#allocation2], %s622
        %p624 = scmp.lt.s32.totalorder %s25, 1
        %s625 = scalar_select %p624, %s25, 1
        %s626 = smul.addr %s625, 4
        %s627 = smul.addr %s626, 8
        %s628 = scalar_lea.vmem %s5, %s627
        %p629 = scmp.lt.s32.totalorder %s25, 1
        %s630 = scalar_select %p629, %s25, 1
        %s631 = scalar_lea.vmem %s6, %s630
        // Predicated region
        $region41: #{tpu_custom_call.1} parent=35 // pred_check
          %p632 = pneg %p144
        $region42: #{tpu_custom_call.1} parent=35 // pred_check_branch
          %634 = sbr.rel (%p632) target = $region44
        $region43: #{tpu_custom_call.1} parent=35 // pred_region
          %s636 = ssub.s32 64, 64
          %637 = vsyncadd %s620, %s636
          %s638 = smul.addr %s25, 2
          %s639 = sadd.s32 %s26, %s638
          %s640 = smul.addr %s639, 64
          %s641 = scalar_lea.hbm %s4, %s640
          %s643 = sshll.u32 %s623, 4
          %s644 = int_to_ptr.vmem [resolvable:$true] %s643
          %646 = dma.vmem_to_hbm [thread:$0]  %s644, 64, %s641, %s620
        $region44: #{tpu_custom_call.1} parent=35 // pred_fallthru
          _
        // Predicated region
        $region45: #{tpu_custom_call.1} parent=35 // pred_check
          %p647 = pneg %p170
        $region46: #{tpu_custom_call.1} parent=35 // pred_check_branch
          %649 = sbr.rel (%p647) target = $region48
        $region47: #{tpu_custom_call.1} parent=35 // pred_region
          _
        $region48: #{tpu_custom_call.1} parent=35 // pred_fallthru
          _
        // Predicated region
        $region49: #{tpu_custom_call.1} parent=35 // pred_check
          %p650 = pneg %p196
        $region50: #{tpu_custom_call.1} parent=35 // pred_check_branch
          %652 = sbr.rel (%p650) target = $region52
        $region51: #{tpu_custom_call.1} parent=35 // pred_region
          _
        $region52: #{tpu_custom_call.1} parent=35 // pred_fallthru
          _
      $region36: #{tpu_custom_call.1} parent=5 // pred_fallthru
        _
      %p653 = scmp.le.s32.totalorder 2, %s16
      // Predicated region
      $region53: #{tpu_custom_call.1} parent=5 // pred_check
        %p654 = pneg %p653
      $region54: #{tpu_custom_call.1} parent=5 // pred_check_branch
        %656 = sbr.rel (%p654) target = $region56
      $region55: #{tpu_custom_call.1} parent=5 // pred_region
        %s657 = ssub.s32 %s16, 2
        // Predicated region
        $region57: #{tpu_custom_call.1} parent=55 // pred_check
          %p658 = pneg %p150
        $region58: #{tpu_custom_call.1} parent=55 // pred_check_branch
          %660 = sbr.rel (%p658) target = $region60
        $region59: #{tpu_custom_call.1} parent=55 // pred_region
          %s661 = sand.u32 %s135, 1
          %s662 = scalar_lea.sflag [#allocation3], %s661
          %s663 = sand.u32 %s135, 1
          %s664 = smul.addr %s663, 4
          %s665 = scalar_lea.vmem [#allocation2], %s664
          %666 = dma.done %s662, 64
        $region60: #{tpu_custom_call.1} parent=55 // pred_fallthru
          _
        // Predicated region
        $region61: #{tpu_custom_call.1} parent=55 // pred_check
          %p667 = pneg %p176
        $region62: #{tpu_custom_call.1} parent=55 // pred_check_branch
          %669 = sbr.rel (%p667) target = $region64
        $region63: #{tpu_custom_call.1} parent=55 // pred_region
          %p670 = scmp.lt.s32.totalorder %s27, 1
          %s671 = scalar_select %p670, %s27, 1
          %s672 = smul.addr %s671, 4
          %s673 = smul.addr %s672, 8
          %s674 = scalar_lea.vmem %s5, %s673
        $region64: #{tpu_custom_call.1} parent=55 // pred_fallthru
          _
        // Predicated region
        $region65: #{tpu_custom_call.1} parent=55 // pred_check
          %p675 = pneg %p202
        $region66: #{tpu_custom_call.1} parent=55 // pred_check_branch
          %677 = sbr.rel (%p675) target = $region68
        $region67: #{tpu_custom_call.1} parent=55 // pred_region
          %p678 = scmp.lt.s32.totalorder %s27, 1
          %s679 = scalar_select %p678, %s27, 1
          %s680 = scalar_lea.vmem %s6, %s679
        $region68: #{tpu_custom_call.1} parent=55 // pred_fallthru
          _
      $region56: #{tpu_custom_call.1} parent=5 // pred_fallthru
        _
    $region6: #{tpu_custom_call.1} parent=1 // loop_footer
      %s20 = sadd.s32 1, %s16
    $region7: #{tpu_custom_call.1} parent=1 // loop_footer_branch
      %15 = sbr.rel target = $region3
    $region8: #{tpu_custom_call.1} parent=1 // loop_exit
      _
    %681 = vsyncpa [#allocation3], 1
    %s682 = scalar_lea.sflag [#allocation3], 1
    %683 = vsyncpa %s682, 1

</llo_original>
